<compile_context>
chip_gen: v7x
topology: tpu7x:2x2x1
jax: 0.10.0
libtpu: 0.0.40
codegen_flags: <defaults>
</compile_context>

<pallas_src>
import math

import jax
import jax.numpy as jnp
import numpy as np
from jax import lax
from jax.experimental import pallas as pl
from jax.experimental.pallas import tpu as pltpu


def _round_up(x, m):
    return ((x + m - 1) // m) * m


def _make_pol2vec_kernel(t_actual, t_tile):
    def kernel(zflat_ref, gram_ref, grow_ref, rhs_ref, tpp_ref,
               scol_ref, gcol_ref, ev_ref, out_ref):
        # zflat_ref: (R, V*D)    resident, mxu_dtype   zflat[r, o*D+d] = z_rows[o,r,d]
        # gram_ref : (R, V*V)    resident, f32         gram[r, o*V+o2] = z_o[r].z_o2[r]
        # grow_ref : (R, 1)      resident, f32         row biases
        # rhs_ref  : (V*D, Tt)   streamed, mxu_dtype   rhs[o*D+d, t] = -2*tp[o,t]*zc[t,d]
        # tpp_ref  : (V*V, Tt)   streamed, f32         tpp[o*V+o2,t] = tp[o,t]*tp[o2,t]
        # scol_ref : (1, Tt)     streamed, f32         ||z_col(t)||^2
        # gcol_ref : (1, Tt)     streamed, f32         column biases
        # ev_ref   : (R, Tt)     streamed, int8        binary events
        # out_ref  : (1, 1)      resident accumulator  -> total NLL
        i = pl.program_id(0)

        @pl.when(i == 0)
        def _():
            out_ref[...] = jnp.zeros_like(out_ref)

        # Single deep MXU matmul for the cross term (the -2 is folded into rhs).
        cross2 = jnp.dot(zflat_ref[...], rhs_ref[...],
                         preferred_element_type=jnp.float32)          # (R, Tt)
        # ||z_row(t)||^2 via the time-independent Gram matrix: one small matmul.
        s_row = jnp.dot(gram_ref[...], tpp_ref[...],
                        preferred_element_type=jnp.float32)           # (R, Tt)

        d2 = jnp.maximum(s_row + cross2 + scol_ref[...], 0.0)
        dist = jnp.sqrt(d2)
        logits = grow_ref[...] + gcol_ref[...] - dist                 # (R, Tt)

        ev = ev_ref[...].astype(jnp.float32)
        # Stable BCE-with-logits:  -log p = softplus(logits) - ev * logits
        elem = jnp.logaddexp(logits, 0.0) - ev * logits

        # Mask padded tail columns of the last tile.
        col = i * t_tile + lax.broadcasted_iota(jnp.int32, (1, t_tile), 1)
        elem = jnp.where(col < t_actual, elem, 0.0)

        out_ref[...] += jnp.sum(elem, keepdims=True)

    return kernel


def pol2vec_binary_forward(events, col_indices, events_time,
                           z_rows, z_cols, gamma_rows, gamma_cols,
                           *, t_tile=512, mxu_dtype=jnp.float32):
    """Pallas implementation of Pol2VecBinary.forward (returns scalar loss)."""
    V, R, D = z_rows.shape
    T = int(events_time.shape[0])

    # Lane-aligned tile over T and padding of the column axis.
    T_TILE = max(128, (min(t_tile, _round_up(T, 128)) // 128) * 128)
    T_pad = _round_up(T, T_TILE)
    n_tiles = T_pad // T_TILE
    pad = T_pad - T

    # ---- wrapper glue (gather, time-polynomial table, Gram matrix) ----
    times = jnp.pad(events_time.astype(jnp.float32), (0, pad))
    ci = jnp.pad(col_indices.astype(jnp.int32), (0, pad))          # pad -> col 0 (masked)
    ev = jnp.pad(events.astype(jnp.int8), ((0, 0), (0, pad)))      # int8 stream

    # tp[o, t] = t**o / o!
    tp = jnp.stack([times ** o / float(math.factorial(o)) for o in range(V)])   # (V, Tp)
    tpp = (tp[:, None, :] * tp[None, :, :]).reshape(V * V, T_pad)               # (V*V, Tp)

    zc = z_cols[ci].astype(jnp.float32)                                         # (Tp, D)
    s_col = jnp.sum(zc * zc, axis=-1)[None, :]                                  # (1, Tp)
    # Pre-scaled, -2-folded RHS: rhs[o*D+d, t] = -2 * tp[o,t] * zc[t,d]
    rhs = (-2.0 * tp[:, None, :] * zc.T[None, :, :]).reshape(V * D, T_pad)      # (V*D, Tp)

    z_rows_f = z_rows.astype(jnp.float32)
    zflat = jnp.transpose(z_rows_f, (1, 0, 2)).reshape(R, V * D)                # (R, V*D)
    gram = jnp.einsum("vrd,wrd->rvw", z_rows_f, z_rows_f).reshape(R, V * V)     # (R, V*V)

    grow = gamma_rows.reshape(R, 1).astype(jnp.float32)
    gcol = gamma_cols[ci][None, :].astype(jnp.float32)

    # Narrow only the large matmul operands; accumulation stays f32.
    zflat = zflat.astype(mxu_dtype)
    rhs = rhs.astype(mxu_dtype)

    mxu_bytes = jnp.dtype(mxu_dtype).itemsize
    cost = pl.CostEstimate(
        flops=int(2 * R * T_pad * (V * D + V * V) + 12 * R * T_pad),
        transcendentals=int(3 * R * T_pad),
        bytes_accessed=int(R * T_pad                       # events (int8)
                           + V * D * T_pad * mxu_bytes     # rhs
                           + V * V * T_pad * 4             # tpp
                           + 2 * T_pad * 4                 # s_col, gcol
                           + R * (V * D * mxu_bytes + V * V * 4 + 4)  # resident
                           + 4),
    )

    out = pl.pallas_call(
        _make_pol2vec_kernel(T, T_TILE),
        out_shape=jax.ShapeDtypeStruct((1, 1), jnp.float32),
        grid=(n_tiles,),
        in_specs=[
            pl.BlockSpec((R, V * D), lambda i: (0, 0)),       # zflat (resident)
            pl.BlockSpec((R, V * V), lambda i: (0, 0)),       # gram  (resident)
            pl.BlockSpec((R, 1), lambda i: (0, 0)),           # grow  (resident)
            pl.BlockSpec((V * D, T_TILE), lambda i: (0, i)),  # rhs   (streamed)
            pl.BlockSpec((V * V, T_TILE), lambda i: (0, i)),  # tpp   (streamed)
            pl.BlockSpec((1, T_TILE), lambda i: (0, i)),      # s_col (streamed)
            pl.BlockSpec((1, T_TILE), lambda i: (0, i)),      # gcol  (streamed)
            pl.BlockSpec((R, T_TILE), lambda i: (0, i)),      # ev    (streamed int8)
        ],
        out_specs=pl.BlockSpec((1, 1), lambda i: (0, 0)),
        compiler_params=pltpu.CompilerParams(
            dimension_semantics=("arbitrary",),
            vmem_limit_bytes=32 * 1024 * 1024,
        ),
        cost_estimate=cost,
    )(zflat, gram, grow, rhs, tpp, s_col, gcol, ev)
    return out[0, 0]


def pol2vec_binary_forward_ref(events, col_indices, events_time,
                               z_rows, z_cols, gamma_rows, gamma_cols):
    """Pure-JAX reference mirroring the PyTorch forward (direct diff + sigmoid/log)."""
    V, R, D = z_rows.shape
    times = events_time.astype(jnp.float32)
    tp = jnp.stack([times ** o / float(math.factorial(o)) for o in range(V)])   # (V, T)
    z_pos = jnp.einsum("vrd,vt->rtd", z_rows.astype(jnp.float32), tp)           # (R, T, D)
    zc = z_cols[col_indices].astype(jnp.float32)                                # (T, D)
    diff = z_pos - zc[None, :, :]
    dist = jnp.sqrt(jnp.sum(diff * diff, axis=-1))                              # (R, T)
    logits = gamma_rows[:, None] + gamma_cols[col_indices][None, :] - dist
    p_event = jax.nn.sigmoid(logits)
    ev = events.astype(jnp.float32)
    p_mat = 1.0 - ev - (1.0 - 2.0 * ev) * p_event
    return -jnp.sum(jnp.log(p_mat))


def _make_inputs(key, R, D, V, T, COL_SIZE):
    k_gc, k_gr, k_zc, k_zr, k_ev, k_ci, k_t = jax.random.split(key, 7)
    gamma_cols = jax.random.uniform(k_gc, (COL_SIZE,), dtype=jnp.float32)
    gamma_rows = jax.random.uniform(k_gr, (R,), dtype=jnp.float32)
    z_cols = jax.random.uniform(k_zc, (COL_SIZE, D), dtype=jnp.float32)
    z_rows = jax.random.uniform(k_zr, (V, R, D), dtype=jnp.float32)
    events = (jax.random.uniform(k_ev, (R, T)) < 0.3).astype(jnp.int8)
    col_indices = jax.random.randint(k_ci, (T,), 0, COL_SIZE, dtype=jnp.int32)
    events_time = jax.random.uniform(k_t, (T,), dtype=jnp.float32)
    return events, col_indices, events_time, z_rows, z_cols, gamma_rows, gamma_cols


if __name__ == "__main__":
    key = jax.random.PRNGKey(0)
    k1, k2 = jax.random.split(key, 2)

    # --- test 1: small shapes consistent with the module (single tile) ---
    R, D, ORDER, T, COL_SIZE = 16, 8, 2, 8, 12
    V = ORDER + 1
    args1 = _make_inputs(k1, R, D, V, T, COL_SIZE)

    loss = jax.block_until_ready(pol2vec_binary_forward(*args1))
    loss_ref = jax.block_until_ready(pol2vec_binary_forward_ref(*args1))
    np.testing.assert_allclose(np.asarray(loss), np.asarray(loss_ref),
                               rtol=1e-4, atol=1e-3)

    # bf16 MXU-operand path (production default for v6e/v7x); looser tolerance.
    loss_bf16 = jax.block_until_ready(
        pol2vec_binary_forward(*args1, mxu_dtype=jnp.bfloat16))
    np.testing.assert_allclose(np.asarray(loss_bf16), np.asarray(loss_ref),
                               rtol=1e-1, atol=1e-1)

    # --- test 2: multi-tile grid + tail masking (T not a multiple of the tile) ---
    T2, COL2 = 200, 40
    args2 = _make_inputs(k2, R, D, V, T2, COL2)
    loss2 = jax.block_until_ready(pol2vec_binary_forward(*args2, t_tile=128))
    loss2_ref = jax.block_until_ready(pol2vec_binary_forward_ref(*args2))
    np.testing.assert_allclose(np.asarray(loss2), np.asarray(loss2_ref),
                               rtol=1e-4, atol=1e-2)

    print("KERNEL_OK")
</pallas_src>

<mosaic_0001>
module attributes {stable_mosaic.version = 11 : i64} {
  func.func @kernel(%arg0: i32, %arg1: memref<16x24xf32, #tpu.memory_space<vmem>>, %arg2: memref<16x9xf32, #tpu.memory_space<vmem>>, %arg3: memref<16x1xf32, #tpu.memory_space<vmem>>, %arg4: memref<24x128xf32, #tpu.memory_space<vmem>>, %arg5: memref<9x128xf32, #tpu.memory_space<vmem>>, %arg6: memref<1x128xf32, #tpu.memory_space<vmem>>, %arg7: memref<1x128xf32, #tpu.memory_space<vmem>>, %arg8: memref<16x128xi8, #tpu.memory_space<vmem>>, %arg9: memref<1x1xf32, #tpu.memory_space<vmem>>) attributes {dimension_semantics = [#tpu.dimension_semantics<arbitrary>], iteration_bounds = array<i64: 1>, scalar_prefetch = 0 : i64, scratch_operands = 0 : i64, tpu.core_type = #tpu.core_type<tc>, window_params = [{pipeline_mode = #tpu.pipeline_mode<synchronous>, transform_indices = @transform_0, window_bounds = array<i64: 16, 24>}, {pipeline_mode = #tpu.pipeline_mode<synchronous>, transform_indices = @transform_1, window_bounds = array<i64: 16, 9>}, {pipeline_mode = #tpu.pipeline_mode<synchronous>, transform_indices = @transform_2, window_bounds = array<i64: 16, 1>}, {transform_indices = @transform_3, window_bounds = array<i64: 24, 128>}, {transform_indices = @transform_4, window_bounds = array<i64: 9, 128>}, {transform_indices = @transform_5, window_bounds = array<i64: 1, 128>}, {transform_indices = @transform_6, window_bounds = array<i64: 1, 128>}, {transform_indices = @transform_7, window_bounds = array<i64: 16, 128>}, {pipeline_mode = #tpu.pipeline_mode<synchronous>, transform_indices = @transform_8, window_bounds = array<i64: 1, 1>}]} {
    %c0_i32 = arith.constant 0 : i32
    %0 = arith.cmpi eq, %arg0, %c0_i32 : i32
    %1 = arith.extui %0 : i1 to i32
    %c0_i32_0 = arith.constant 0 : i32
    %2 = arith.cmpi ne, %1, %c0_i32_0 : i32
    scf.if %2 {
      %cst_26 = arith.constant 0.000000e+00 : f32
      %58 = vector.broadcast %cst_26 : f32 to vector<1x1xf32>
      %c0_27 = arith.constant 0 : index
      %c0_28 = arith.constant 0 : index
      %59 = vector.load %arg9[%c0_27, %c0_28] : memref<1x1xf32, #tpu.memory_space<vmem>>, vector<1x1xf32>
      tpu.vector_store %arg9[%c0_27, %c0_28], %58 {strides = array<i32>} : memref<1x1xf32, #tpu.memory_space<vmem>>, vector<1x1xf32>,
    } else {
    }
    %c0 = arith.constant 0 : index
    %c0_1 = arith.constant 0 : index
    %3 = vector.load %arg1[%c0, %c0_1] : memref<16x24xf32, #tpu.memory_space<vmem>>, vector<16x24xf32>
    %c0_2 = arith.constant 0 : index
    %c0_3 = arith.constant 0 : index
    %4 = vector.load %arg4[%c0_2, %c0_3] : memref<24x128xf32, #tpu.memory_space<vmem>>, vector<24x128xf32>
    %cst = arith.constant dense<0.000000e+00> : vector<16x128xf32>
    %5 = tpu.matmul %3, %4, %cst {dimension_numbers = #tpu.dot_dimension_numbers<[1], [0], [0], [1], [0, 0, 1, 1], [], []>} : vector<16x24xf32>, vector<24x128xf32>, vector<16x128xf32> -> vector<16x128xf32>
    %c0_4 = arith.constant 0 : index
    %c0_5 = arith.constant 0 : index
    %6 = vector.load %arg2[%c0_4, %c0_5] : memref<16x9xf32, #tpu.memory_space<vmem>>, vector<16x9xf32>
    %c0_6 = arith.constant 0 : index
    %c0_7 = arith.constant 0 : index
    %7 = vector.load %arg5[%c0_6, %c0_7] : memref<9x128xf32, #tpu.memory_space<vmem>>, vector<9x128xf32>
    %cst_8 = arith.constant dense<0.000000e+00> : vector<16x128xf32>
    %8 = tpu.matmul %6, %7, %cst_8 {dimension_numbers = #tpu.dot_dimension_numbers<[1], [0], [0], [1], [0, 0, 1, 1], [], []>} : vector<16x9xf32>, vector<9x128xf32>, vector<16x128xf32> -> vector<16x128xf32>
    %9 = arith.addf %8, %5 : vector<16x128xf32>
    %c0_9 = arith.constant 0 : index
    %c0_10 = arith.constant 0 : index
    %10 = vector.load %arg6[%c0_9, %c0_10] : memref<1x128xf32, #tpu.memory_space<vmem>>, vector<1x128xf32>
    %11 = vector.broadcast %10 : vector<1x128xf32> to vector<16x128xf32>
    %12 = arith.addf %9, %11 : vector<16x128xf32>
    %cst_11 = arith.constant 0.000000e+00 : f32
    %13 = vector.broadcast %cst_11 : f32 to vector<16x128xf32>
    %14 = arith.maximumf %12, %13 : vector<16x128xf32>
    %15 = math.sqrt %14 : vector<16x128xf32>
    %c0_12 = arith.constant 0 : index
    %c0_13 = arith.constant 0 : index
    %16 = vector.load %arg3[%c0_12, %c0_13] : memref<16x1xf32, #tpu.memory_space<vmem>>, vector<16x1xf32>
    %c0_14 = arith.constant 0 : index
    %c0_15 = arith.constant 0 : index
    %17 = vector.load %arg7[%c0_14, %c0_15] : memref<1x128xf32, #tpu.memory_space<vmem>>, vector<1x128xf32>
    %18 = vector.broadcast %16 : vector<16x1xf32> to vector<16x128xf32>
    %19 = vector.broadcast %17 : vector<1x128xf32> to vector<16x128xf32>
    %20 = arith.addf %18, %19 : vector<16x128xf32>
    %21 = arith.subf %20, %15 : vector<16x128xf32>
    %c0_16 = arith.constant 0 : index
    %c0_17 = arith.constant 0 : index
    %22 = vector.load %arg8[%c0_16, %c0_17] : memref<16x128xi8, #tpu.memory_space<vmem>>, vector<16x128xi8>
    %23 = arith.sitofp %22 : vector<16x128xi8> to vector<16x128xf32>
    %cst_18 = arith.constant 0.000000e+00 : f32
    %24 = vector.broadcast %cst_18 : f32 to vector<16x128xf32>
    %25 = arith.maximumf %21, %24 : vector<16x128xf32>
    %26 = vector.broadcast %cst_18 : f32 to vector<16x128xf32>
    %27 = arith.subf %21, %26 : vector<16x128xf32>
    %28 = arith.cmpf one, %27, %27 : vector<16x128xf32>
    %29 = vector.broadcast %cst_18 : f32 to vector<16x128xf32>
    %30 = arith.addf %21, %29 : vector<16x128xf32>
    %31 = math.absf %27 : vector<16x128xf32>
    %cst_19 = arith.constant 0.000000e+00 : f32
    %32 = vector.broadcast %cst_19 : f32 to vector<16x128xf32>
    %33 = arith.subf %32, %31 : vector<16x128xf32>
    %34 = math.exp %33 : vector<16x128xf32>
    %35 = math.log1p %34 : vector<16x128xf32>
    %36 = arith.addf %25, %35 : vector<16x128xf32>
    %37 = arith.select %28, %30, %36 : vector<16x128xi1>, vector<16x128xf32>
    %38 = arith.mulf %23, %21 : vector<16x128xf32>
    %39 = arith.subf %37, %38 : vector<16x128xf32>
    %c128_i32 = arith.constant 128 : i32
    %40 = arith.muli %arg0, %c128_i32 : i32
    %41 = tpu.iota {dimensions = array<i32: 1>} : vector<1x128xi32>
    %42 = vector.broadcast %40 : i32 to vector<1x128xi32>
    %43 = arith.addi %42, %41 : vector<1x128xi32>
    %c8_i32 = arith.constant 8 : i32
    %44 = vector.broadcast %c8_i32 : i32 to vector<1x128xi32>
    %45 = arith.cmpi slt, %43, %44 : vector<1x128xi32>
    %cst_20 = arith.constant 0.000000e+00 : f32
    %46 = vector.shape_cast %45 : vector<1x128xi1> to vector<1x128xi1>
    %47 = vector.broadcast %46 : vector<1x128xi1> to vector<16x128xi1>
    %48 = vector.broadcast %cst_20 : f32 to vector<16x128xf32>
    %49 = arith.select %47, %39, %48 : vector<16x128xi1>, vector<16x128xf32>
    %c0_21 = arith.constant 0 : index
    %c0_22 = arith.constant 0 : index
    %50 = vector.load %arg9[%c0_21, %c0_22] : memref<1x1xf32, #tpu.memory_space<vmem>>, vector<1x1xf32>
    %51 = vector.shape_cast %49 : vector<16x128xf32> to vector<1x16x128xf32>
    %cst_23 = arith.constant dense<0.000000e+00> : vector<1xf32>
    %52 = vector.multi_reduction <add>, %51, %cst_23 [1, 2] : vector<1x16x128xf32> to vector<1xf32>
    %53 = vector.shape_cast %52 : vector<1xf32> to vector<1x1x1xf32>
    %54 = vector.extract %53[0, 0, 0] : f32 from vector<1x1x1xf32>
    %55 = vector.broadcast %54 : f32 to vector<1x1xf32>
    %56 = arith.addf %50, %55 : vector<1x1xf32>
    %c0_24 = arith.constant 0 : index
    %c0_25 = arith.constant 0 : index
    %57 = vector.load %arg9[%c0_24, %c0_25] : memref<1x1xf32, #tpu.memory_space<vmem>>, vector<1x1xf32>
    tpu.vector_store %arg9[%c0_24, %c0_25], %56 {strides = array<i32>} : memref<1x1xf32, #tpu.memory_space<vmem>>, vector<1x1xf32>,
    return
  }
  func.func @transform_0(%arg0: i32) -> (i32, i32) {
    %c0_i32 = arith.constant 0 : i32
    %c0_i32_0 = arith.constant 0 : i32
    %c0_i32_1 = arith.constant 0 : i32
    return %c0_i32, %c0_i32_0 : i32, i32
  }
  func.func @transform_1(%arg0: i32) -> (i32, i32) {
    %c0_i32 = arith.constant 0 : i32
    %c0_i32_0 = arith.constant 0 : i32
    %c0_i32_1 = arith.constant 0 : i32
    return %c0_i32, %c0_i32_0 : i32, i32
  }
  func.func @transform_2(%arg0: i32) -> (i32, i32) {
    %c0_i32 = arith.constant 0 : i32
    %c0_i32_0 = arith.constant 0 : i32
    %c0_i32_1 = arith.constant 0 : i32
    return %c0_i32, %c0_i32_0 : i32, i32
  }
  func.func @transform_3(%arg0: i32) -> (i32, i32) {
    %c0_i32 = arith.constant 0 : i32
    %c0_i32_0 = arith.constant 0 : i32
    return %c0_i32, %arg0 : i32, i32
  }
  func.func @transform_4(%arg0: i32) -> (i32, i32) {
    %c0_i32 = arith.constant 0 : i32
    %c0_i32_0 = arith.constant 0 : i32
    return %c0_i32, %arg0 : i32, i32
  }
  func.func @transform_5(%arg0: i32) -> (i32, i32) {
    %c0_i32 = arith.constant 0 : i32
    %c0_i32_0 = arith.constant 0 : i32
    return %c0_i32, %arg0 : i32, i32
  }
  func.func @transform_6(%arg0: i32) -> (i32, i32) {
    %c0_i32 = arith.constant 0 : i32
    %c0_i32_0 = arith.constant 0 : i32
    return %c0_i32, %arg0 : i32, i32
  }
  func.func @transform_7(%arg0: i32) -> (i32, i32) {
    %c0_i32 = arith.constant 0 : i32
    %c0_i32_0 = arith.constant 0 : i32
    return %c0_i32, %arg0 : i32, i32
  }
  func.func @transform_8(%arg0: i32) -> (i32, i32) {
    %c0_i32 = arith.constant 0 : i32
    %c0_i32_0 = arith.constant 0 : i32
    %c0_i32_1 = arith.constant 0 : i32
    return %c0_i32, %c0_i32_0 : i32, i32
  }
}

</mosaic_0001>

<llo_original>
// kernel: tpu_custom_call.1
$region0: #{tpu_custom_call.1}
  #allocation0 [shape = 'u32[]', space=smem, size = 0x4, offset = 0x4, fixed_abs, tag = 'smem constant byte address 0x4 - core index']
  #allocation1 [shape = 'u32[144,128]{1,0:T(1,128)}', space=vmem, size = 0x12000, scoped, tag = 'internal scratch']
  %s0 = inlined_call_operand.hbm [shape: f32[16,24], index: 0, kind: input, shape index: {}]
  %s1 = inlined_call_operand.hbm [shape: f32[16,9], index: 1, kind: input, shape index: {}]
  %s2 = inlined_call_operand.vmem [shape: f32[16,1], index: 2, kind: input, shape index: {}]
  %s3 = inlined_call_operand.vmem [shape: f32[24,128], index: 3, kind: input, shape index: {}]
  %s4 = inlined_call_operand.hbm [shape: f32[9,128], index: 4, kind: input, shape index: {}]
  %s5 = inlined_call_operand.vmem [shape: f32[1,128], index: 5, kind: input, shape index: {}]
  %s6 = inlined_call_operand.vmem [shape: f32[1,128], index: 6, kind: input, shape index: {}]
  %s7 = inlined_call_operand.vmem [shape: s8[16,128], index: 7, kind: input, shape index: {}]
  %s8 = inlined_call_operand.hbm [shape: f32[1,1], index: 8, kind: output, shape index: {}]
  %s9 = sld [smem:[#allocation0]]
  $region58: #{tpu_custom_call.1} parent=0
    _
  %s11 = ssub.s32 1, %s9
  %s12 = scalar_select 0, %s11, %s9
  $region1: #{tpu_custom_call.1} parent=0
    #allocation2 [shape = 'u8[8192]{0}', space=vmem, size = 0x2000, scoped, tag = 'input window, operand 0, single buffered']
    #allocation3 [shape = 's32[1]{0}', space=sflag, size = 0x4, scoped, tag = 'scoped memory for tpu_custom_call.1']
    #allocation4 [shape = 's32[1]{0}', space=sflag, size = 0x4, scoped, tag = 'scoped memory for tpu_custom_call.1']
    #allocation5 [shape = 'u8[8192]{0}', space=vmem, size = 0x2000, scoped, tag = 'input window, operand 1, single buffered']
    #allocation6 [shape = 's32[1]{0}', space=sflag, size = 0x4, scoped, tag = 'scoped memory for tpu_custom_call.1']
    #allocation7 [shape = 'u8[8192]{0}', space=vmem, size = 0x2000, scoped, tag = 'input window, operand 4, single buffered']
    #allocation8 [shape = 'u8[512]{0}', space=vmem, size = 0x400, scoped, tag = 'output window, operand 0, single buffered']
    %13 = vsyncpa [#allocation3], 0
    %14 = vsyncpa [#allocation6], 0
    %15 = vsyncpa [#allocation4], 0
    // Predicated region
    $region2: #{tpu_custom_call.1} parent=1 // pred_check
      _
    $region3: #{tpu_custom_call.1} parent=1 // pred_check_branch
      %17 = sbr.rel (0) target = $region5
    $region4: #{tpu_custom_call.1} parent=1 // pred_region
      %s19 = ssub.s32 256, 256
      %20 = vsyncadd [#allocation3], %s19
      %s21 = sshll.u32 [#allocation2], 4
      %s22 = int_to_ptr.vmem [resolvable:$true] %s21
      %27 = dma.hbm_to_vmem [thread:$0]  %s0, 256, %s22, [#allocation3], 128, 128, 8
    $region5: #{tpu_custom_call.1} parent=1 // pred_fallthru
      _
    // Predicated region
    $region6: #{tpu_custom_call.1} parent=1 // pred_check
      _
    $region7: #{tpu_custom_call.1} parent=1 // pred_check_branch
      %29 = sbr.rel (0) target = $region9
    $region8: #{tpu_custom_call.1} parent=1 // pred_region
      %s31 = ssub.s32 256, 256
      %32 = vsyncadd [#allocation6], %s31
      %s33 = sshll.u32 [#allocation5], 4
      %s34 = int_to_ptr.vmem [resolvable:$true] %s33
      %39 = dma.hbm_to_vmem [thread:$0]  %s1, 256, %s34, [#allocation6], 128, 128, 8
    $region9: #{tpu_custom_call.1} parent=1 // pred_fallthru
      _
    // Predicated region
    $region10: #{tpu_custom_call.1} parent=1 // pred_check
      _
    $region11: #{tpu_custom_call.1} parent=1 // pred_check_branch
      %41 = sbr.rel (0) target = $region13
    $region12: #{tpu_custom_call.1} parent=1 // pred_region
      _
    $region13: #{tpu_custom_call.1} parent=1 // pred_fallthru
      _
    // Predicated region
    $region14: #{tpu_custom_call.1} parent=1 // pred_check
      _
    $region15: #{tpu_custom_call.1} parent=1 // pred_check_branch
      %43 = sbr.rel (0) target = $region17
    $region16: #{tpu_custom_call.1} parent=1 // pred_region
      _
    $region17: #{tpu_custom_call.1} parent=1 // pred_fallthru
      _
    // Predicated region
    $region18: #{tpu_custom_call.1} parent=1 // pred_check
      _
    $region19: #{tpu_custom_call.1} parent=1 // pred_check_branch
      %45 = sbr.rel (0) target = $region21
    $region20: #{tpu_custom_call.1} parent=1 // pred_region
      %s47 = ssub.s32 256, 256
      %48 = vsyncadd [#allocation6], %s47
      %s49 = sshll.u32 [#allocation7], 4
      %s50 = int_to_ptr.vmem [resolvable:$true] %s49
      %55 = dma.hbm_to_vmem [thread:$0]  %s4, 256, %s50, [#allocation6], 128, 128, 8
    $region21: #{tpu_custom_call.1} parent=1 // pred_fallthru
      _
    // Predicated region
    $region22: #{tpu_custom_call.1} parent=1 // pred_check
      _
    $region23: #{tpu_custom_call.1} parent=1 // pred_check_branch
      %57 = sbr.rel (0) target = $region25
    $region24: #{tpu_custom_call.1} parent=1 // pred_region
      _
    $region25: #{tpu_custom_call.1} parent=1 // pred_fallthru
      _
    // Predicated region
    $region26: #{tpu_custom_call.1} parent=1 // pred_check
      _
    $region27: #{tpu_custom_call.1} parent=1 // pred_check_branch
      %59 = sbr.rel (0) target = $region29
    $region28: #{tpu_custom_call.1} parent=1 // pred_region
      _
    $region29: #{tpu_custom_call.1} parent=1 // pred_fallthru
      _
    // Predicated region
    $region30: #{tpu_custom_call.1} parent=1 // pred_check
      _
    $region31: #{tpu_custom_call.1} parent=1 // pred_check_branch
      %61 = sbr.rel (0) target = $region33
    $region32: #{tpu_custom_call.1} parent=1 // pred_region
      _
    $region33: #{tpu_custom_call.1} parent=1 // pred_fallthru
      _
    // Predicated region
    $region34: #{tpu_custom_call.1} parent=1 // pred_check
      _
    $region35: #{tpu_custom_call.1} parent=1 // pred_check_branch
      %63 = sbr.rel (0) target = $region37
    $region36: #{tpu_custom_call.1} parent=1 // pred_region
      %64 = dma.done [#allocation3], 256
    $region37: #{tpu_custom_call.1} parent=1 // pred_fallthru
      _
    // Predicated region
    $region38: #{tpu_custom_call.1} parent=1 // pred_check
      _
    $region39: #{tpu_custom_call.1} parent=1 // pred_check_branch
      %66 = sbr.rel (0) target = $region41
    $region40: #{tpu_custom_call.1} parent=1 // pred_region
      %67 = dma.done [#allocation6], 256
    $region41: #{tpu_custom_call.1} parent=1 // pred_fallthru
      _
    // Predicated region
    $region42: #{tpu_custom_call.1} parent=1 // pred_check
      _
    $region43: #{tpu_custom_call.1} parent=1 // pred_check_branch
      %69 = sbr.rel (0) target = $region45
    $region44: #{tpu_custom_call.1} parent=1 // pred_region
      %70 = dma.done [#allocation6], 256
    $region45: #{tpu_custom_call.1} parent=1 // pred_fallthru
      _
    %p71 = scmp.eq.s32.totalorder 0, 0
    // Predicated region
    $region46: #{tpu_custom_call.1} parent=1 // pred_check
      %p72 = pneg %p71
    $region47: #{tpu_custom_call.1} parent=1 // pred_check_branch
      %74 = sbr.rel (%p72) target = $region49
    $region48: #{tpu_custom_call.1} parent=1 // pred_region
      %vm75 = vcmask 0
      %76 = vst.msk [vmem:[#allocation8] sm:$0x1] %vm75, 0.0
    $region49: #{tpu_custom_call.1} parent=1 // pred_fallthru
      _
    %v77 = vld [vmem:[#allocation2] sm:$0xff]
    %v78 = vld [vmem:[#allocation2 + $0x8] sm:$0xff]
    %v79 = vld [vmem:[%s3] sm:$0xff]
    %v80 = vld [vmem:[%s3 + $0x8] sm:$0xff]
    %v81 = vld [vmem:[%s3 + $0x10] sm:$0xff]
    %vm82 = vcmask 195584
    %v84 = vsel %vm82, %v77, 0
    %v87 = vsel %vm82, %v78, 0
    %89 = vmatprep.subr.mxu0 0.0
    %90 = vmatpush1.msra.mxu0 %v79
    %91 = vmatprep.subr.mxu0 0.0
    %92 = vmatpush1.msra.mxu0 %v80
    %93 = vmatprep.subr.mxu0 0.0
    %94 = vmatpush1.msra.mxu0 %v81
    %95 = vmatprep.subr.mxu0 0.0
    %96 = vmatpush1.msra.mxu0 0.0
    %97 = vmatprep.subr.mxu0 0.0
    %98 = vmatpush1.msra.mxu0 0.0
    %99 = vmatprep.subr.mxu0 0.0
    %100 = vmatpush1.msra.mxu0 0.0
    %101 = vmatprep.subr.mxu0 0.0
    %102 = vmatpush1.msra.mxu0 0.0
    %103 = vmatprep.subr.mxu0 0.0
    %104 = vmatpush1.msra.mxu0 0.0
    %105 = vmatprep.subr.mxu0 0.0
    %106 = vmatpush1.msra.mxu0 0.0
    %107 = vmatprep.subr.mxu0 0.0
    %108 = vmatpush1.msra.mxu0 0.0
    %109 = vmatprep.subr.mxu0 0.0
    %110 = vmatpush1.msra.mxu0 0.0
    %111 = vmatprep.subr.mxu0 0.0
    %112 = vmatpush1.msra.mxu0 0.0
    %113 = vmatprep.subr.mxu0 0.0
    %114 = vmatpush1.msra.mxu0 0.0
    %115 = vmatprep.subr.mxu0 0.0
    %116 = vmatpush1.msra.mxu0 0.0
    %117 = vmatprep.subr.mxu0 0.0
    %118 = vmatpush1.msra.mxu0 0.0
    %119 = vmatprep.subr.mxu0 0.0
    %120 = vmatpush1.msra.mxu0 0.0
    %121 = vmatprep.subr.mxu0 0.0
    %122 = vmatpush1.msra.mxu0 0.0
    %123 = vmatprep.subr.mxu0 0.0
    %124 = vmatpush1.msra.mxu0 0.0
    %125 = vmatprep.subr.mxu0 0.0
    %126 = vmatpush1.msra.mxu0 0.0
    %127 = vmatprep.subr.mxu0 0.0
    %128 = vmatpush1.msra.mxu0 0.0
    %129 = vmatprep.subr.mxu0 0.0
    %130 = vmatpush1.msra.mxu0 0.0
    %131 = vmatprep.subr.mxu0 0.0
    %132 = vmatpush1.msra.mxu0 0.0
    %133 = vmatprep.subr.mxu0 0.0
    %134 = vmatpush1.msra.mxu0 0.0
    %135 = vmatprep.subr.mxu0 0.0
    %136 = vmatpush1.msra.mxu0 0.0
    %137 = vmatprep.subr.mxu0 0.0
    %138 = vmatpush1.msra.mxu0 0.0
    %139 = vmatprep.subr.mxu0 0.0
    %140 = vmatpush1.msra.mxu0 0.0
    %141 = vmatprep.subr.mxu0 0.0
    %142 = vmatpush1.msra.mxu0 0.0
    %143 = vmatprep.subr.mxu0 0.0
    %144 = vmatpush1.msra.mxu0 0.0
    %145 = vmatprep.subr.mxu0 0.0
    %146 = vmatpush1.msra.mxu0 0.0
    %147 = vmatprep.subr.mxu0 0.0
    %148 = vmatpush1.msra.mxu0 0.0
    %149 = vmatprep.subr.mxu0 0.0
    %150 = vmatpush1.msra.mxu0 0.0
    %151 = vmatprep.subr.mxu0 0.0
    %152 = vmatpush1.msra.mxu0 0.0
    %153 = vmatprep.mubr.f32.mxu0 0.0
    %154 = vmatmul.mubr.f32.gmra.mrb[0].mxu0 %v84
    %v155 = vpop.f32.mrb[0].mxu0
    %v156 = vadd.f32 0.0, %v155
    %v157 = vpop.f32.mrb[0].mxu0
    %158 = vmatprep.mubr.f32.mxu0 0.0
    %159 = vmatmul.mubr.f32.gmra.mrb[0].mxu0 %v87
    %v160 = vpop.f32.mrb[0].mxu0
    %v161 = vadd.f32 0.0, %v160
    %v162 = vpop.f32.mrb[0].mxu0
    %163 = vdwg.mxu0
    %v164 = vld [vmem:[#allocation5] sm:$0xff]
    %v165 = vld [vmem:[#allocation5 + $0x8] sm:$0xff]
    %v166 = vld [vmem:[#allocation7] sm:$0xff]
    %v167 = vld [vmem:[#allocation7 + $0x8] sm:$0x1]
    %vm168 = vcmask 72704
    %v170 = vsel %vm168, %v164, 0
    %v173 = vsel %vm168, %v165, 0
    %vm175 = vcmask 1040384
    %v177 = vsel %vm175, %v167, 0
    %179 = vmatprep.subr.mxu0 0.0
    %180 = vmatpush1.msra.mxu0 %v166
    %181 = vmatprep.subr.mxu0 0.0
    %182 = vmatpush1.msra.mxu0 %v177
    %183 = vmatprep.subr.mxu0 0.0
    %184 = vmatpush1.msra.mxu0 0.0
    %185 = vmatprep.subr.mxu0 0.0
    %186 = vmatpush1.msra.mxu0 0.0
    %187 = vmatprep.subr.mxu0 0.0
    %188 = vmatpush1.msra.mxu0 0.0
    %189 = vmatprep.subr.mxu0 0.0
    %190 = vmatpush1.msra.mxu0 0.0
    %191 = vmatprep.subr.mxu0 0.0
    %192 = vmatpush1.msra.mxu0 0.0
    %193 = vmatprep.subr.mxu0 0.0
    %194 = vmatpush1.msra.mxu0 0.0
    %195 = vmatprep.subr.mxu0 0.0
    %196 = vmatpush1.msra.mxu0 0.0
    %197 = vmatprep.subr.mxu0 0.0
    %198 = vmatpush1.msra.mxu0 0.0
    %199 = vmatprep.subr.mxu0 0.0
    %200 = vmatpush1.msra.mxu0 0.0
    %201 = vmatprep.subr.mxu0 0.0
    %202 = vmatpush1.msra.mxu0 0.0
    %203 = vmatprep.subr.mxu0 0.0
    %204 = vmatpush1.msra.mxu0 0.0
    %205 = vmatprep.subr.mxu0 0.0
    %206 = vmatpush1.msra.mxu0 0.0
    %207 = vmatprep.subr.mxu0 0.0
    %208 = vmatpush1.msra.mxu0 0.0
    %209 = vmatprep.subr.mxu0 0.0
    %210 = vmatpush1.msra.mxu0 0.0
    %211 = vmatprep.subr.mxu0 0.0
    %212 = vmatpush1.msra.mxu0 0.0
    %213 = vmatprep.subr.mxu0 0.0
    %214 = vmatpush1.msra.mxu0 0.0
    %215 = vmatprep.subr.mxu0 0.0
    %216 = vmatpush1.msra.mxu0 0.0
    %217 = vmatprep.subr.mxu0 0.0
    %218 = vmatpush1.msra.mxu0 0.0
    %219 = vmatprep.subr.mxu0 0.0
    %220 = vmatpush1.msra.mxu0 0.0
    %221 = vmatprep.subr.mxu0 0.0
    %222 = vmatpush1.msra.mxu0 0.0
    %223 = vmatprep.subr.mxu0 0.0
    %224 = vmatpush1.msra.mxu0 0.0
    %225 = vmatprep.subr.mxu0 0.0
    %226 = vmatpush1.msra.mxu0 0.0
    %227 = vmatprep.subr.mxu0 0.0
    %228 = vmatpush1.msra.mxu0 0.0
    %229 = vmatprep.subr.mxu0 0.0
    %230 = vmatpush1.msra.mxu0 0.0
    %231 = vmatprep.subr.mxu0 0.0
    %232 = vmatpush1.msra.mxu0 0.0
    %233 = vmatprep.subr.mxu0 0.0
    %234 = vmatpush1.msra.mxu0 0.0
    %235 = vmatprep.subr.mxu0 0.0
    %236 = vmatpush1.msra.mxu0 0.0
    %237 = vmatprep.subr.mxu0 0.0
    %238 = vmatpush1.msra.mxu0 0.0
    %239 = vmatprep.subr.mxu0 0.0
    %240 = vmatpush1.msra.mxu0 0.0
    %241 = vmatprep.subr.mxu0 0.0
    %242 = vmatpush1.msra.mxu0 0.0
    %243 = vmatprep.mubr.f32.mxu0 0.0
    %244 = vmatmul.mubr.f32.gmra.mrb[0].mxu0 %v170
    %v245 = vpop.f32.mrb[0].mxu0
    %v246 = vadd.f32 %v156, %v245
    %v247 = vpop.f32.mrb[0].mxu0
    %248 = vmatprep.mubr.f32.mxu0 0.0
    %249 = vmatmul.mubr.f32.gmra.mrb[0].mxu0 %v173
    %v250 = vpop.f32.mrb[0].mxu0
    %v251 = vadd.f32 %v161, %v250
    %v252 = vpop.f32.mrb[0].mxu0
    %253 = vdwg.mxu0
    %v254 = vld [vmem:[%s5] sm:$0x1]
    %v256 = vlaneseq
    %v257 = vshrl.u32 %v256, 7
    %v258 = vsub.s32 0, %v257
    %v259 = vrot.slane %v254, %v258
    %v261 = vadd.f32 %v246, %v259
    %v262 = vadd.f32 %v251, %v259
    %v263 = vmax.f32 %v261, 0.0
    %v264 = vmax.f32 %v262, 0.0
    %v265 = vrsqrt.pop %v263
    %v266 = vmul.f32 %v263, %v265
    %vm267 = vcmp.eq.f32.partialorder %v263, inf
    %v268 = vsel %vm267, %v263, %v266
    %vm269 = vcmp.eq.f32.partialorder %v263, 0.0
    %v270 = vand.u32 %v263, 2147483648
    %v271 = vsel %vm269, %v270, %v268
    %v272 = vrsqrt.pop %v264
    %v273 = vmul.f32 %v264, %v272
    %vm274 = vcmp.eq.f32.partialorder %v264, inf
    %v275 = vsel %vm274, %v264, %v273
    %vm276 = vcmp.eq.f32.partialorder %v264, 0.0
    %v277 = vand.u32 %v264, 2147483648
    %v278 = vsel %vm276, %v277, %v275
    %v279 = vld [vmem:[%s2] sm:$0xff]
    %v280 = vld [vmem:[%s2 + $0x8] sm:$0xff]
    %v281 = vld [vmem:[%s6] sm:$0x1]
    %283 = vset.pattern.permute.xlu0 0
    %284 = vperm.xlu0 %283, %v279
    %v285 = vpop.permute.xlu0 %284
    %288 = vset.pattern.permute.xlu0 0
    %289 = vperm.xlu0 %288, %v280
    %v290 = vpop.permute.xlu0 %289
    %v293 = vlaneseq
    %v294 = vshrl.u32 %v293, 7
    %v295 = vsub.s32 0, %v294
    %v296 = vrot.slane %v281, %v295
    %v298 = vadd.f32 %v285, %v296
    %v299 = vadd.f32 %v290, %v296
    %v300 = vsub.f32 %v298, %v271
    %v301 = vsub.f32 %v299, %v278
    %v302 = vld [vmem:[%s7] sm:$0x3]
    %v303 = vld [vmem:[%s7 + $0x2] sm:$0x3]
    %v304 = vunpack.c.0.s8 %v302
    %v305 = vunpack.c.0.s8 %v303
    %v306 = vcvt.s32.f32 %v304
    %v307 = vcvt.s32.f32 %v305
    %v308 = vmax.f32 %v300, 0.0
    %v309 = vmax.f32 %v301, 0.0
    %vm310 = vcmp.ne.f32.partialorder %v300, %v300
    %vm311 = vcmp.ne.f32.partialorder %v301, %v301
    %v312 = vadd.f32 %v300, 0.0
    %v313 = vadd.f32 %v301, 0.0
    %v314 = vand.u32 2147483647, %v300
    %v315 = vand.u32 2147483647, %v301
    %v316 = vsub.f32 0.0, %v314
    %v317 = vsub.f32 0.0, %v315
    %v318 = vmul.f32 %v316, 1.442695
    %v319 = vpow.pop %v318
    %v320 = vmul.f32 %v317, 1.442695
    %v321 = vpow.pop %v320
    %v322 = vadd.f32 %v319, 1.0
    %v323 = vlog2.pop %v322
    %v324 = vmul.f32 %v323, 0.6931472
    %v325 = vmul.f32 -0.5, %v319
    %v326 = vadd.f32 %v325, 1.0
    %v327 = vmul.f32 %v326, %v319
    %v328 = vand.u32 2147483647, %v319
    %vm329 = vcmp.lt.f32.partialorder %v328, 0.0004427343
    %v330 = vsel %vm329, %v327, %v324
    %v331 = vadd.f32 %v321, 1.0
    %v332 = vlog2.pop %v331
    %v333 = vmul.f32 %v332, 0.6931472
    %v334 = vmul.f32 -0.5, %v321
    %v335 = vadd.f32 %v334, 1.0
    %v336 = vmul.f32 %v335, %v321
    %v337 = vand.u32 2147483647, %v321
    %vm338 = vcmp.lt.f32.partialorder %v337, 0.0004427343
    %v339 = vsel %vm338, %v336, %v333
    %v340 = vadd.f32 %v308, %v330
    %v341 = vadd.f32 %v309, %v339
    %v342 = vsel %vm310, %v312, %v340
    %v343 = vsel %vm311, %v313, %v341
    %v344 = vmul.f32 %v306, %v300
    %v345 = vmul.f32 %v307, %v301
    %v346 = vsub.f32 %v342, %v344
    %v347 = vsub.f32 %v343, %v345
    %s348 = smul.u32 0, 128
    %v349 = vlaneseq
    %v350 = vand.u32 %v349, 127
    %v351 = vstv %s348
    %v352 = vadd.s32 %v351, %v350
    %vm353 = vcmp.lt.s32.totalorder %v352, 8
    %v354 = vsel %vm353, 1, 0
    %vm355 = vcmp.eq.s32.totalorder %v354, 1
    %v356 = vsel %vm355, %v346, 0.0
    %v357 = vsel %vm355, %v347, 0.0
    %v358 = vld [vmem:[#allocation8] sm:$0x1]
    %v359 = vadd.f32 %v356, %v357
    %360 = vadd.xlane.f32.xlu0 %v359
    %v361 = vpop.xlane.xlu0 %360
    %v362 = vrot.slane %v361, 4
    %v363 = vadd.f32 %v361, %v362
    %v364 = vrot.slane %v363, 2
    %v365 = vadd.f32 %v363, %v364
    %v366 = vrot.slane %v365, 1
    %v367 = vadd.f32 %v365, %v366
    %s368 = vtos %v367
    %v369 = vstv %s368
    %v370 = vadd.f32 %v358, %v369
    %vm371 = vcmask 0
    %372 = vst.msk [vmem:[#allocation8] sm:$0x1] %vm371, %v370
    // Predicated region
    $region50: #{tpu_custom_call.1} parent=1 // pred_check
      _
    $region51: #{tpu_custom_call.1} parent=1 // pred_check_branch
      %374 = sbr.rel (0) target = $region53
    $region52: #{tpu_custom_call.1} parent=1 // pred_region
      %s376 = ssub.s32 16, 16
      %377 = vsyncadd [#allocation4], %s376
      %s379 = sshll.u32 [#allocation8], 4
      %s380 = int_to_ptr.vmem [resolvable:$true] %s379
      %382 = dma.vmem_to_hbm [thread:$0]  %s380, 16, %s8, [#allocation4]
    $region53: #{tpu_custom_call.1} parent=1 // pred_fallthru
      _
    // Predicated region
    $region54: #{tpu_custom_call.1} parent=1 // pred_check
      _
    $region55: #{tpu_custom_call.1} parent=1 // pred_check_branch
      %384 = sbr.rel (0) target = $region57
    $region56: #{tpu_custom_call.1} parent=1 // pred_region
      %385 = dma.done [#allocation4], 16
    $region57: #{tpu_custom_call.1} parent=1 // pred_fallthru
      _
    %386 = vsyncpa [#allocation3], 1
    %387 = vsyncpa [#allocation6], 1
    %388 = vsyncpa [#allocation4], 1

</llo_original>
